<compile_context>
chip_gen: v6e
topology: v6e:2x2x1
jax: 0.10.0
libtpu: 0.0.40
codegen_flags: <defaults>
</compile_context>

<pallas_src>
import math

import jax
import jax.numpy as jnp
from jax.experimental import pallas as pl
from jax.experimental.pallas import tpu as pltpu


def _pool_kernel(pw_ref, x_ref, o_ref):
    # pw_ref : (W, W//8)   0/(1/512) pooling matrix, resident across the grid
    # x_ref  : (B*H, W)    one slab of B images
    # o_ref  : (B*H//8, W//8)
    bh, w = x_ref.shape
    bh8 = bh // 8

    # Sublane (H-axis) pool: dense load, single bulk upcast, 8->1 cross-sublane sum.
    acc = x_ref[...].astype(jnp.float32).reshape(bh8, 8, w).sum(axis=1)

    # Lane (W-axis) pool + /512: one tall matmul against the pooling matrix.
    out = jnp.dot(acc, pw_ref[...], preferred_element_type=jnp.float32)

    o_ref[...] = (out - 1.0).astype(o_ref.dtype)


def _choose_batch(nc, h8, bytes_per_image, target_block_bytes):
    """Images per grid step."""
    # Output-block sublane dim (B*H8) must be a multiple of 8 (unless B == NC,
    # where it equals the full output dim and is legal regardless).
    m = 8 // math.gcd(h8, 8)
    b = max(1, int(target_block_bytes // bytes_per_image))
    # Require >=4 grid steps when possible (2 per v7x TensorCore + pipeline
    # overlap), else >=2. Cap BEFORE rounding; round DOWN so the grid can't
    # collapse back to fewer steps.
    for steps in (4, 2):
        if nc >= steps * m:
            b = min(b, nc // steps)
            break
    b = max(m, (b // m) * m)
    if b >= nc:
        b = nc  # single full block: B*H8 == full output dim -> always legal
    return b


def motion_encoder_pool(x, *, target_block_bytes=8 * 1024 * 1024):
    """x: (N, C, H, W) with H, W divisible by 8. Returns (N, C, H//8, W//8)."""
    N, C, H, W = x.shape
    assert H % 8 == 0 and W % 8 == 0, "H, W must be divisible by 8"
    H8, W8 = H // 8, W // 8
    NC = N * C

    itemsize = jnp.dtype(x.dtype).itemsize
    B = _choose_batch(NC, H8, H * W * itemsize, target_block_bytes)
    G = pl.cdiv(NC, B)  # partial last block allowed: no input padding/copy

    # Lane-dense 2-D layout: each grid step reads one contiguous (B*H, W) slab.
    x2d = x.reshape(NC * H, W)

    # 0/(1/512) pooling matrix (W, W8); built once, resident in VMEM across grid.
    src = jax.lax.broadcasted_iota(jnp.int32, (W, W8), 0) // 8
    dst = jax.lax.broadcasted_iota(jnp.int32, (W, W8), 1)
    pw = jnp.where(src == dst, 1.0 / 512.0, 0.0).astype(jnp.float32)

    in_bytes = NC * H * W * itemsize
    out_bytes = NC * H8 * W8 * itemsize
    cost = pl.CostEstimate(
        flops=int(2 * NC * H8 * W * W8 + 7 * NC * H8 * W),
        transcendentals=0,
        bytes_accessed=int(in_bytes + out_bytes + W * W8 * 4),
    )

    out2d = pl.pallas_call(
        _pool_kernel,
        out_shape=jax.ShapeDtypeStruct((NC * H8, W8), x.dtype),
        grid_spec=pltpu.PrefetchScalarGridSpec(
            num_scalar_prefetch=0,
            grid=(G,),
            in_specs=[
                pl.BlockSpec((W, W8), lambda g: (0, 0)),      # pw (constant -> fetched once)
                pl.BlockSpec((B * H, W), lambda g: (g, 0)),   # input slab
            ],
            out_specs=pl.BlockSpec((B * H8, W8), lambda g: (g, 0)),
        ),
        compiler_params=pltpu.CompilerParams(
            dimension_semantics=("parallel",),
            vmem_limit_bytes=32 * 1024 * 1024,
        ),
        cost_estimate=cost,
    )(pw, x2d)

    return out2d.reshape(N, C, H8, W8)


def _reference(x):
    # Pure-JAX reference mirroring the PyTorch forward exactly.
    def avgpool2(a):
        n, c, h, w = a.shape
        return a.reshape(n, c, h // 2, 2, w // 2, 2).mean(axis=(3, 5))
    x1 = avgpool2(x) / 2
    x2 = avgpool2(x1) / 2
    x3 = avgpool2(x2) / 2
    return x3 - 1


if __name__ == "__main__":
    key = jax.random.PRNGKey(0)

    # Test 1: NC divisible by the chosen block (exact grid).
    x = jax.random.normal(key, (2, 4, 16, 16), dtype=jnp.float32)
    out = jax.block_until_ready(motion_encoder_pool(x))
    ref = _reference(x)
    assert out.shape == (2, 4, 2, 2)
    assert jnp.allclose(out, ref, atol=1e-5, rtol=1e-5)

    # Test 2: ragged NC (partial last grid block, masked writeback path).
    x2 = jax.random.normal(jax.random.PRNGKey(1), (2, 5, 16, 16), dtype=jnp.float32)
    out2 = jax.block_until_ready(motion_encoder_pool(x2))
    ref2 = _reference(x2)
    assert out2.shape == (2, 5, 2, 2)
    assert jnp.allclose(out2, ref2, atol=1e-5, rtol=1e-5)

    print("KERNEL_OK")
</pallas_src>

<mosaic_0001>
module attributes {stable_mosaic.version = 11 : i64} {
  func.func @_pool_kernel(%arg0: i32, %arg1: memref<16x2xf32, #tpu.memory_space<vmem>>, %arg2: memref<64x16xf32, #tpu.memory_space<vmem>>, %arg3: memref<8x2xf32, #tpu.memory_space<vmem>>) attributes {dimension_semantics = [#tpu.dimension_semantics<parallel>], iteration_bounds = array<i64: 2>, scalar_prefetch = 0 : i64, scratch_operands = 0 : i64, tpu.core_type = #tpu.core_type<tc>, window_params = [{pipeline_mode = #tpu.pipeline_mode<synchronous>, transform_indices = @transform_0, window_bounds = array<i64: 16, 2>}, {transform_indices = @transform_1, window_bounds = array<i64: 64, 16>}, {transform_indices = @transform_2, window_bounds = array<i64: 8, 2>}]} {
    %c0 = arith.constant 0 : index
    %c0_0 = arith.constant 0 : index
    %0 = vector.load %arg2[%c0, %c0_0] : memref<64x16xf32, #tpu.memory_space<vmem>>, vector<64x16xf32>
    %1 = vector.shape_cast %0 : vector<64x16xf32> to vector<8x8x16xf32>
    %cst = arith.constant dense<0.000000e+00> : vector<8x16xf32>
    %2 = vector.multi_reduction <add>, %1, %cst [1] : vector<8x8x16xf32> to vector<8x16xf32>
    %c0_1 = arith.constant 0 : index
    %c0_2 = arith.constant 0 : index
    %3 = vector.load %arg1[%c0_1, %c0_2] : memref<16x2xf32, #tpu.memory_space<vmem>>, vector<16x2xf32>
    %cst_3 = arith.constant dense<0.000000e+00> : vector<8x2xf32>
    %4 = tpu.matmul %2, %3, %cst_3 {dimension_numbers = #tpu.dot_dimension_numbers<[1], [0], [0], [1], [0, 0, 1, 1], [], []>} : vector<8x16xf32>, vector<16x2xf32>, vector<8x2xf32> -> vector<8x2xf32>
    %cst_4 = arith.constant 1.000000e+00 : f32
    %5 = vector.broadcast %cst_4 : f32 to vector<8x2xf32>
    %6 = arith.subf %4, %5 : vector<8x2xf32>
    %c0_5 = arith.constant 0 : index
    %c0_6 = arith.constant 0 : index
    %7 = vector.load %arg3[%c0_5, %c0_6] : memref<8x2xf32, #tpu.memory_space<vmem>>, vector<8x2xf32>
    tpu.vector_store %arg3[%c0_5, %c0_6], %6 {strides = array<i32>} : memref<8x2xf32, #tpu.memory_space<vmem>>, vector<8x2xf32>,
    return
  }
  func.func @transform_0(%arg0: i32) -> (i32, i32) {
    %c0_i32 = arith.constant 0 : i32
    %c0_i32_0 = arith.constant 0 : i32
    %c0_i32_1 = arith.constant 0 : i32
    return %c0_i32, %c0_i32_0 : i32, i32
  }
  func.func @transform_1(%arg0: i32) -> (i32, i32) {
    %c0_i32 = arith.constant 0 : i32
    %c0_i32_0 = arith.constant 0 : i32
    return %arg0, %c0_i32 : i32, i32
  }
  func.func @transform_2(%arg0: i32) -> (i32, i32) {
    %c0_i32 = arith.constant 0 : i32
    %c0_i32_0 = arith.constant 0 : i32
    return %arg0, %c0_i32 : i32, i32
  }
}

</mosaic_0001>

<llo_original>
// kernel: tpu_custom_call.1
$region0: #{tpu_custom_call.1}
  #allocation0 [shape = 'u32[]', space=smem, size = 0x4, offset = 0x4, fixed_abs, tag = 'smem constant byte address 0x4 - core index']
  #allocation1 [shape = 'u32[144,128]{1,0:T(1,128)}', space=vmem, size = 0x12000, scoped, tag = 'internal scratch']
  %s0 = inlined_call_operand.vmem [shape: f32[16,2], index: 0, kind: input, shape index: {}]
  %s1 = inlined_call_operand.vmem [shape: f32[128,16], index: 1, kind: input, shape index: {}]
  %s2 = inlined_call_operand.vmem [shape: f32[16,2], index: 2, kind: output, shape index: {}]
  %s3 = sld [smem:[#allocation0]]
  $region41: #{tpu_custom_call.1} parent=0
    _
  %s5 = ssub.s32 1, %s3
  %s6 = scalar_select 0, %s5, %s3
  loop: start=0, step=1, limit=4
  $region2: #{tpu_custom_call.1} parent=0 // loop_pre_header
    _
  $region3: #{tpu_custom_call.1} parent=0 // loop_header
    %s8 = sphi 0, %s12
    %p9 = scmp.ge.s32.totalorder %s8, 4
    %s16 = sphi 0, %s16
    %s18 = sphi 0, %s16
    %s19 = sphi 0, %s18
    %s33 = sphi 0, %s19
    %s39 = sphi 0, %s41
    %s42 = sphi 0, %s39
    %s43 = sphi 0, %s42
    %s59 = sphi 0, %s43
    %s65 = sphi 0, %s67
    %s68 = sphi 0, %s65
    %s69 = sphi 0, %s68
    %s85 = sphi 0, %s69
  $region4: #{tpu_custom_call.1} parent=0 // loop_header_branch
    %11 = sbr.rel (%p9) target = $region8
  $region5: #{tpu_custom_call.1} parent=0 // loop_body
    %s13 = ssub.s32 %s8, 1
    %s14 = ssub.s32 %s8, 2
    %s15 = sadd.s32 %s8, 1
    %s17 = sadd.s32 %s16, 1
    %p20 = scmp.eq.s32.totalorder %s8, 1
    %p21 = scmp.ne.s32.totalorder %s16, %s18
    %p22 = scmp.eq.s32.totalorder %s8, 0
    %p23 = por %p21, %p22
    %p24 = scmp.ne.s32.totalorder %s16, %s18
    %p25 = scmp.eq.s32.totalorder %s13, 1
    %p26 = por %p24, %p25
    %p27 = scmp.ne.s32.totalorder %s18, %s19
    %p28 = scmp.eq.s32.totalorder %s13, 0
    %p29 = por %p27, %p28
    %p30 = scmp.ne.s32.totalorder %s18, %s19
    %p31 = scmp.eq.s32.totalorder %s14, 1
    %p32 = por %p30, %p31
    %p34 = scmp.ne.s32.totalorder %s19, %s33
    %p35 = scmp.eq.s32.totalorder %s14, 0
    %p36 = por %p34, %p35
    %s37 = ssub.s32 %s8, %s15
    %p38 = scmp.eq.s32.totalorder %s37, 0
    %s40 = sadd.s32 %s39, 1
    %s41 = scalar_select %p38, %s39, %s40
    %p44 = pneg %p38
    %p45 = scmp.eq.s32.totalorder %s8, 1
    %p46 = por %p44, %p45
    %p47 = scmp.ne.s32.totalorder %s39, %s42
    %p48 = scmp.eq.s32.totalorder %s8, 0
    %p49 = por %p47, %p48
    %p50 = scmp.ne.s32.totalorder %s39, %s42
    %p51 = scmp.eq.s32.totalorder %s13, 1
    %p52 = por %p50, %p51
    %p53 = scmp.ne.s32.totalorder %s42, %s43
    %p54 = scmp.eq.s32.totalorder %s13, 0
    %p55 = por %p53, %p54
    %p56 = scmp.ne.s32.totalorder %s42, %s43
    %p57 = scmp.eq.s32.totalorder %s14, 1
    %p58 = por %p56, %p57
    %p60 = scmp.ne.s32.totalorder %s43, %s59
    %p61 = scmp.eq.s32.totalorder %s14, 0
    %p62 = por %p60, %p61
    %s63 = ssub.s32 %s8, %s15
    %p64 = scmp.eq.s32.totalorder %s63, 0
    %s66 = sadd.s32 %s65, 1
    %s67 = scalar_select %p64, %s65, %s66
    %p70 = pneg %p64
    %p71 = scmp.eq.s32.totalorder %s8, 1
    %p72 = por %p70, %p71
    %p73 = scmp.ne.s32.totalorder %s65, %s68
    %p74 = scmp.eq.s32.totalorder %s8, 0
    %p75 = por %p73, %p74
    %p76 = scmp.ne.s32.totalorder %s65, %s68
    %p77 = scmp.eq.s32.totalorder %s13, 1
    %p78 = por %p76, %p77
    %p79 = scmp.ne.s32.totalorder %s68, %s69
    %p80 = scmp.eq.s32.totalorder %s13, 0
    %p81 = por %p79, %p80
    %p82 = scmp.ne.s32.totalorder %s68, %s69
    %p83 = scmp.eq.s32.totalorder %s14, 1
    %p84 = por %p82, %p83
    %p86 = scmp.ne.s32.totalorder %s69, %s85
    %p87 = scmp.eq.s32.totalorder %s14, 0
    %p88 = por %p86, %p87
    %p89 = scmp.le.s32.totalorder 1, %s8
    %p90 = scmp.lt.s32.totalorder %s8, 3
    %p91 = pnand %p89, %p90
    %p92 = pneg %p91
    // Predicated region
    $region9: #{tpu_custom_call.1} parent=5 // pred_check
      _
    $region10: #{tpu_custom_call.1} parent=5 // pred_check_branch
      %94 = sbr.rel (%p91) target = $region12
    $region11: #{tpu_custom_call.1} parent=5 // pred_region
      %s95 = ssub.s32 %s8, 1
      // Predicated region
      $region13: #{tpu_custom_call.1} parent=11 // pred_check
        %p96 = pneg %p29
      $region14: #{tpu_custom_call.1} parent=11 // pred_check_branch
        %98 = sbr.rel (%p96) target = $region16
      $region15: #{tpu_custom_call.1} parent=11 // pred_region
        _
      $region16: #{tpu_custom_call.1} parent=11 // pred_fallthru
        _
    $region12: #{tpu_custom_call.1} parent=5 // pred_fallthru
      _
    %p99 = scmp.lt.s32.totalorder %s8, 2
    // Predicated region
    $region17: #{tpu_custom_call.1} parent=5 // pred_check
      %p100 = pneg %p99
    $region18: #{tpu_custom_call.1} parent=5 // pred_check_branch
      %102 = sbr.rel (%p100) target = $region20
    $region19: #{tpu_custom_call.1} parent=5 // pred_region
      // Predicated region
      $region21: #{tpu_custom_call.1} parent=19 // pred_check
        %p103 = pneg %p49
      $region22: #{tpu_custom_call.1} parent=19 // pred_check_branch
        %105 = sbr.rel (%p103) target = $region24
      $region23: #{tpu_custom_call.1} parent=19 // pred_region
        %s106 = smul.u32 8, %s8
        %p107 = scmp.lt.s32.totalorder %s106, 15
        %s108 = scalar_select %p107, %s106, 15
        %s109 = smul.addr %s108, 8
        %s110 = scalar_lea.vmem %s1, %s109
        %s111 = smul.u32 8, %s8
      $region24: #{tpu_custom_call.1} parent=19 // pred_fallthru
        _
    $region20: #{tpu_custom_call.1} parent=5 // pred_fallthru
      _
    %p112 = scmp.le.s32.totalorder 1, %s8
    %p113 = scmp.lt.s32.totalorder %s8, 3
    %p114 = pnand %p112, %p113
    %p115 = pneg %p114
    // Predicated region
    $region25: #{tpu_custom_call.1} parent=5 // pred_check
      _
    $region26: #{tpu_custom_call.1} parent=5 // pred_check_branch
      %117 = sbr.rel (%p114) target = $region28
    $region27: #{tpu_custom_call.1} parent=5 // pred_region
      %s118 = ssub.s32 %s8, 1
      %p119 = pneg %p29
      %p120 = pneg %p26
      %s121 = smul.u32 8, %s13
      %p122 = scmp.lt.s32.totalorder %s121, 15
      %s123 = scalar_select %p122, %s121, 15
      %s124 = smul.addr %s123, 8
      %s125 = scalar_lea.vmem %s1, %s124
      %p126 = pneg %p55
      %p127 = pneg %p52
      %p128 = pneg %p81
      %p129 = pneg %p78
      %p130 = scmp.lt.s32.totalorder %s13, 1
      %s131 = scalar_select %p130, %s13, 1
      %s132 = smul.addr %s131, 8
      %s133 = scalar_lea.vmem %s2, %s132
      %s134 = smul.u32 8, %s13
      %p135 = scmp.lt.s32.totalorder %s134, 15
      %s136 = scalar_select %p135, %s134, 15
      %s137 = smul.addr %s136, 8
      %s138 = scalar_lea.vmem %s1, %s137
      %s139 = smul.u32 8, %s13
      %p140 = scmp.lt.s32.totalorder %s13, 1
      %s141 = scalar_select %p140, %s13, 1
      %s142 = smul.addr %s141, 8
      %s143 = scalar_lea.vmem %s2, %s142
      %v144 = vld [vmem:[%s138] sm:$0xff]
      %v145 = vld [vmem:[%s138 + $0x8] sm:$0xff]
      %v146 = vld [vmem:[%s138 + $0x10] sm:$0xff]
      %v147 = vld [vmem:[%s138 + $0x18] sm:$0xff]
      %v148 = vld [vmem:[%s138 + $0x20] sm:$0xff]
      %v149 = vld [vmem:[%s138 + $0x28] sm:$0xff]
      %v150 = vld [vmem:[%s138 + $0x30] sm:$0xff]
      %v151 = vld [vmem:[%s138 + $0x38] sm:$0xff]
      %vm152 = vcmask 130048
      %v153 = vsel %vm152, %v144, 0.0
      %v154 = vrot.slane %v153, 4
      %v155 = vadd.f32 %v153, %v154
      %v156 = vrot.slane %v155, 2
      %v157 = vadd.f32 %v155, %v156
      %v158 = vrot.slane %v157, 1
      %v159 = vadd.f32 %v157, %v158
      %v160 = vsel %vm152, %v145, 0.0
      %v161 = vrot.slane %v160, 4
      %v162 = vadd.f32 %v160, %v161
      %v163 = vrot.slane %v162, 2
      %v164 = vadd.f32 %v162, %v163
      %v165 = vrot.slane %v164, 1
      %v166 = vadd.f32 %v164, %v165
      %v167 = vsel %vm152, %v146, 0.0
      %v168 = vrot.slane %v167, 4
      %v169 = vadd.f32 %v167, %v168
      %v170 = vrot.slane %v169, 2
      %v171 = vadd.f32 %v169, %v170
      %v172 = vrot.slane %v171, 1
      %v173 = vadd.f32 %v171, %v172
      %v174 = vsel %vm152, %v147, 0.0
      %v175 = vrot.slane %v174, 4
      %v176 = vadd.f32 %v174, %v175
      %v177 = vrot.slane %v176, 2
      %v178 = vadd.f32 %v176, %v177
      %v179 = vrot.slane %v178, 1
      %v180 = vadd.f32 %v178, %v179
      %v181 = vsel %vm152, %v148, 0.0
      %v182 = vrot.slane %v181, 4
      %v183 = vadd.f32 %v181, %v182
      %v184 = vrot.slane %v183, 2
      %v185 = vadd.f32 %v183, %v184
      %v186 = vrot.slane %v185, 1
      %v187 = vadd.f32 %v185, %v186
      %v188 = vsel %vm152, %v149, 0.0
      %v189 = vrot.slane %v188, 4
      %v190 = vadd.f32 %v188, %v189
      %v191 = vrot.slane %v190, 2
      %v192 = vadd.f32 %v190, %v191
      %v193 = vrot.slane %v192, 1
      %v194 = vadd.f32 %v192, %v193
      %v195 = vsel %vm152, %v150, 0.0
      %v196 = vrot.slane %v195, 4
      %v197 = vadd.f32 %v195, %v196
      %v198 = vrot.slane %v197, 2
      %v199 = vadd.f32 %v197, %v198
      %v200 = vrot.slane %v199, 1
      %v201 = vadd.f32 %v199, %v200
      %v202 = vsel %vm152, %v151, 0.0
      %v203 = vrot.slane %v202, 4
      %v204 = vadd.f32 %v202, %v203
      %v205 = vrot.slane %v204, 2
      %v206 = vadd.f32 %v204, %v205
      %v207 = vrot.slane %v206, 1
      %v208 = vadd.f32 %v206, %v207
      %v209 = vld [vmem:[%s0] sm:$0xff]
      %v210 = vld [vmem:[%s0 + $0x8] sm:$0xff]
      %vm219 = vcmask 1041409
      %v220 = vsel %vm219, %v166, %v159
      %vm221 = vcmask 1042434
      %v222 = vsel %vm221, %v173, %v220
      %vm223 = vcmask 1043459
      %v224 = vsel %vm223, %v180, %v222
      %vm225 = vcmask 1044484
      %v226 = vsel %vm225, %v187, %v224
      %vm227 = vcmask 1045509
      %v228 = vsel %vm227, %v194, %v226
      %vm229 = vcmask 1046534
      %v230 = vsel %vm229, %v201, %v228
      %vm231 = vcmask 1047559
      %v232 = vsel %vm231, %v208, %v230
      %v233 = vsel %vm152, %v232, 0
      %235 = vmatprep.subr.mxu0 0.0
      %236 = vmatpush1.msra.mxu0 0.0
      %237 = vmatprep.subr.mxu0 0.0
      %238 = vmatpush1.msra.mxu0 0.0
      %239 = vmatprep.subr.mxu0 0.0
      %240 = vmatpush1.msra.mxu0 0.0
      %241 = vmatprep.subr.mxu0 0.0
      %242 = vmatpush1.msra.mxu0 0.0
      %243 = vmatprep.subr.mxu0 0.0
      %244 = vmatpush1.msra.mxu0 0.0
      %245 = vmatprep.subr.mxu0 0.0
      %246 = vmatpush1.msra.mxu0 0.0
      %247 = vmatprep.subr.mxu0 0.0
      %248 = vmatpush1.msra.mxu0 0.0
      %249 = vmatprep.subr.mxu0 0.0
      %250 = vmatpush1.msra.mxu0 0.0
      %251 = vmatprep.subr.mxu0 0.0
      %252 = vmatpush1.msra.mxu0 0.0
      %253 = vmatprep.subr.mxu0 0.0
      %254 = vmatpush1.msra.mxu0 0.0
      %255 = vmatprep.subr.mxu0 0.0
      %256 = vmatpush1.msra.mxu0 0.0
      %257 = vmatprep.subr.mxu0 0.0
      %258 = vmatpush1.msra.mxu0 0.0
      %259 = vmatprep.subr.mxu0 0.0
      %260 = vmatpush1.msra.mxu0 0.0
      %261 = vmatprep.subr.mxu0 0.0
      %262 = vmatpush1.msra.mxu0 0.0
      %263 = vmatprep.subr.mxu0 0.0
      %264 = vmatpush1.msra.mxu0 %v210
      %265 = vmatprep.subr.mxu0 0.0
      %266 = vmatpush1.msra.mxu0 %v209
      %267 = vmatprep.subr.mxu0 0.0
      %268 = vmatpush2.msra.mxu0 0.0
      %269 = vmatprep.subr.mxu0 0.0
      %270 = vmatpush2.msra.mxu0 0.0
      %271 = vmatprep.subr.mxu0 0.0
      %272 = vmatpush2.msra.mxu0 0.0
      %273 = vmatprep.subr.mxu0 0.0
      %274 = vmatpush2.msra.mxu0 0.0
      %275 = vmatprep.subr.mxu0 0.0
      %276 = vmatpush2.msra.mxu0 0.0
      %277 = vmatprep.subr.mxu0 0.0
      %278 = vmatpush2.msra.mxu0 0.0
      %279 = vmatprep.subr.mxu0 0.0
      %280 = vmatpush2.msra.mxu0 0.0
      %281 = vmatprep.subr.mxu0 0.0
      %282 = vmatpush2.msra.mxu0 0.0
      %283 = vmatprep.subr.mxu0 0.0
      %284 = vmatpush2.msra.mxu0 0.0
      %285 = vmatprep.subr.mxu0 0.0
      %286 = vmatpush2.msra.mxu0 0.0
      %287 = vmatprep.subr.mxu0 0.0
      %288 = vmatpush2.msra.mxu0 0.0
      %289 = vmatprep.subr.mxu0 0.0
      %290 = vmatpush2.msra.mxu0 0.0
      %291 = vmatprep.subr.mxu0 0.0
      %292 = vmatpush2.msra.mxu0 0.0
      %293 = vmatprep.subr.mxu0 0.0
      %294 = vmatpush2.msra.mxu0 0.0
      %295 = vmatprep.subr.mxu0 0.0
      %296 = vmatpush2.msra.mxu0 0.0
      %297 = vmatprep.subr.mxu0 0.0
      %298 = vmatpush2.msra.mxu0 0.0
      %299 = vmatprep.mubr.f32.mxu0 0.0
      %300 = vmatmul.mubr.f32.gmra.mxu0 %v233
      %v301 = vpop.f32.mrf.mxu0
      %v302 = vadd.f32 0.0, %v301
      %v303 = vpop.f32.mrf.mxu0
      %304 = vdwg.mxu0
      %v305 = vsub.f32 %v302, 1.0
      %vm306 = vcmask 15360
      %307 = vst.msk [vmem:[%s143] sm:$0xff] %vm306, %v305
      %p308 = scmp.lt.s32.totalorder %s13, 1
      %s309 = scalar_select %p308, %s13, 1
      %s310 = smul.addr %s309, 8
      %s311 = scalar_lea.vmem %s2, %s310
      // Predicated region
      $region29: #{tpu_custom_call.1} parent=27 // pred_check
        %p312 = pneg %p78
      $region30: #{tpu_custom_call.1} parent=27 // pred_check_branch
        %314 = sbr.rel (%p312) target = $region32
      $region31: #{tpu_custom_call.1} parent=27 // pred_region
        _
      $region32: #{tpu_custom_call.1} parent=27 // pred_fallthru
        _
    $region28: #{tpu_custom_call.1} parent=5 // pred_fallthru
      _
    %p315 = scmp.le.s32.totalorder 2, %s8
    // Predicated region
    $region33: #{tpu_custom_call.1} parent=5 // pred_check
      %p316 = pneg %p315
    $region34: #{tpu_custom_call.1} parent=5 // pred_check_branch
      %318 = sbr.rel (%p316) target = $region36
    $region35: #{tpu_custom_call.1} parent=5 // pred_region
      %s319 = ssub.s32 %s8, 2
      // Predicated region
      $region37: #{tpu_custom_call.1} parent=35 // pred_check
        %p320 = pneg %p84
      $region38: #{tpu_custom_call.1} parent=35 // pred_check_branch
        %322 = sbr.rel (%p320) target = $region40
      $region39: #{tpu_custom_call.1} parent=35 // pred_region
        %p323 = scmp.lt.s32.totalorder %s14, 1
        %s324 = scalar_select %p323, %s14, 1
        %s325 = smul.addr %s324, 8
        %s326 = scalar_lea.vmem %s2, %s325
      $region40: #{tpu_custom_call.1} parent=35 // pred_fallthru
        _
    $region36: #{tpu_custom_call.1} parent=5 // pred_fallthru
      _
  $region6: #{tpu_custom_call.1} parent=0 // loop_footer
    %s12 = sadd.s32 1, %s8
  $region7: #{tpu_custom_call.1} parent=0 // loop_footer_branch
    %7 = sbr.rel target = $region3
  $region8: #{tpu_custom_call.1} parent=0 // loop_exit
    _

</llo_original>
